<compile_context>
chip_gen: v7x
topology: tpu7x:2x2x1
jax: 0.10.0
libtpu: 0.0.40
codegen_flags: <defaults>
</compile_context>

<pallas_src>
import functools

import jax
import jax.numpy as jnp
from jax.experimental import pallas as pl
from jax.experimental.pallas import tpu as pltpu

B_J0 = 0.01
BETA = 1.8   # is_adaptive = 1
DT = 1.0
R_M = 1.0


def _spike_dense_seq_kernel(x_ref, w_ref, bias_ref, tau_m_ref, tau_adp_ref,
                            mem0_ref, spike0_ref, b0_ref,
                            spike_seq_ref, mem_out_ref, b_out_ref,
                            mem_state, spike_state, b_state,
                            alpha_scr, ro_scr,
                            *, use_bf16_matmul):
    t = pl.program_id(0)

    # --- one-time setup: decay factors + initial neuron state into VMEM ---
    @pl.when(t == 0)
    def _init():
        alpha_scr[...] = jnp.exp(-DT / tau_m_ref[...])    # [1, Dout]
        ro_scr[...] = jnp.exp(-DT / tau_adp_ref[...])     # [1, Dout]
        mem_state[...] = mem0_ref[...]
        spike_state[...] = spike0_ref[...]
        b_state[...] = b0_ref[...]

    # --- dense: MXU matmul on the current time slice ---
    x_t = x_ref[0]               # [batch, Din]
    w = w_ref[...]               # [Din, Dout] (resident in VMEM across steps)
    if use_bf16_matmul:          # optional (v6e/v7x, larger shapes); spikes are exact in bf16
        x_t = x_t.astype(jnp.bfloat16)
        w = w.astype(jnp.bfloat16)
    d_input = jnp.dot(x_t, w, preferred_element_type=jnp.float32) + bias_ref[...]

    # --- adaptive LIF membrane update (elementwise, f32 on VPU/EUP) ---
    alpha = alpha_scr[...]
    ro = ro_scr[...]
    spike_old = spike_state[...]

    b_new = ro * b_state[...] + (1.0 - ro) * spike_old
    Bth = B_J0 + BETA * b_new
    mem_new = (mem_state[...] * alpha
               + (1.0 - alpha) * R_M * d_input
               - Bth * spike_old * DT)
    spike_new = (mem_new - Bth > 0.0).astype(jnp.float32)

    # carry state in VMEM scratch; stream only the spike train to HBM
    mem_state[...] = mem_new
    b_state[...] = b_new
    spike_state[...] = spike_new
    spike_seq_ref[0] = spike_new

    # final mem / b written once at the end of the sequence
    @pl.when(t == pl.num_programs(0) - 1)
    def _final():
        mem_out_ref[...] = mem_new
        b_out_ref[...] = b_new


def spike_dense_sequence_forward(x_seq, w, bias, tau_m, tau_adp,
                                 mem, spike, b, *, use_bf16_matmul=False):
    """Run the spike_dense layer over a whole sequence in ONE pallas_call.

    Args:
      x_seq: [T, batch, input_dim] float32 input spikes.
      w:     [input_dim, output_dim], bias/tau_m/tau_adp: [1, output_dim].
      mem/spike/b: [batch, output_dim] initial neuron state.
    Returns:
      (spike_seq [T, batch, output_dim], mem_final, b_final)
    """
    T, batch, din = x_seq.shape
    dout = w.shape[1]

    def const(shape):
        # constant index_map -> block is fetched once and stays resident in VMEM
        return pl.BlockSpec(shape, lambda t, _s=len(shape): (0,) * _s)

    grid_spec = pltpu.PrefetchScalarGridSpec(
        num_scalar_prefetch=0,
        grid=(T,),
        in_specs=[
            pl.BlockSpec((1, batch, din), lambda t: (t, 0, 0)),   # x_t (per step)
            const((din, dout)),                                   # W (resident)
            const((1, dout)),                                     # bias
            const((1, dout)),                                     # tau_m
            const((1, dout)),                                     # tau_adp
            const((batch, dout)),                                 # mem0
            const((batch, dout)),                                 # spike0
            const((batch, dout)),                                 # b0
        ],
        out_specs=(
            pl.BlockSpec((1, batch, dout), lambda t: (t, 0, 0)),  # spike per step
            const((batch, dout)),                                 # final mem (written once)
            const((batch, dout)),                                 # final b   (written once)
        ),
        scratch_shapes=[
            pltpu.VMEM((batch, dout), jnp.float32),   # mem state
            pltpu.VMEM((batch, dout), jnp.float32),   # spike state
            pltpu.VMEM((batch, dout), jnp.float32),   # b state
            pltpu.VMEM((1, dout), jnp.float32),       # alpha
            pltpu.VMEM((1, dout), jnp.float32),       # ro
        ],
    )

    out_shape = (
        jax.ShapeDtypeStruct((T, batch, dout), jnp.float32),
        jax.ShapeDtypeStruct((batch, dout), jnp.float32),
        jax.ShapeDtypeStruct((batch, dout), jnp.float32),
    )

    spike_seq, mem_out, b_out = pl.pallas_call(
        functools.partial(_spike_dense_seq_kernel,
                          use_bf16_matmul=use_bf16_matmul),
        out_shape=out_shape,
        grid_spec=grid_spec,
        compiler_params=pltpu.CompilerParams(
            dimension_semantics=("arbitrary",)),   # time carries state -> sequential
    )(x_seq, w, bias, tau_m, tau_adp, mem, spike, b)
    return spike_seq, mem_out, b_out


def spike_dense_forward(x, w, bias, tau_m, tau_adp, mem, spike, b):
    """Single-step forward matching the torch module; returns (mem, spike, b)."""
    spike_seq, mem_out, b_out = spike_dense_sequence_forward(
        x[None], w, bias, tau_m, tau_adp, mem, spike, b)
    return mem_out, spike_seq[0], b_out


def init_params(key, input_dim, output_dim,
                tauM=20.0, tauM_std=5.0, tauAdp=200.0, tauAdp_std=5.0):
    """Deterministic synthetic init mirroring the module's __init__ shapes."""
    k_w, k_b, k_tm, k_ta = jax.random.split(key, 4)
    bound = 1.0 / jnp.sqrt(jnp.float32(input_dim))
    w = jax.random.uniform(k_w, (input_dim, output_dim), jnp.float32, -bound, bound)
    bias = jax.random.uniform(k_b, (1, output_dim), jnp.float32, -bound, bound)
    # tau_initializer='normal'; clamp away from <=0 so exp(-1/tau) can't blow up.
    tau_m = tauM + tauM_std * jax.random.normal(k_tm, (1, output_dim), jnp.float32)
    tau_adp = tauAdp + tauAdp_std * jax.random.normal(k_ta, (1, output_dim), jnp.float32)
    tau_m = jnp.maximum(tau_m, 1.0)
    tau_adp = jnp.maximum(tau_adp, 1.0)
    return w, bias, tau_m, tau_adp


def set_neuron_state(batch_size, output_dim):
    mem = jnp.zeros((batch_size, output_dim), jnp.float32)
    spike = jnp.zeros((batch_size, output_dim), jnp.float32)
    b = jnp.ones((batch_size, output_dim), jnp.float32) * B_J0
    return mem, spike, b


def _reference_sequence(x_seq, w, bias, tau_m, tau_adp, mem, spike, b):
    """Plain-JAX reference (mem_update_adp loop) for correctness checking."""
    alpha = jnp.exp(-DT / tau_m)
    ro = jnp.exp(-DT / tau_adp)
    spikes = []
    for t in range(x_seq.shape[0]):
        d_input = x_seq[t] @ w + bias
        b = ro * b + (1.0 - ro) * spike
        Bth = B_J0 + BETA * b
        mem = mem * alpha + (1.0 - alpha) * R_M * d_input - Bth * spike * DT
        spike = (mem - Bth > 0.0).astype(jnp.float32)
        spikes.append(spike)
    return jnp.stack(spikes), mem, b


if __name__ == "__main__":
    key = jax.random.PRNGKey(0)
    T, batch, input_dim, output_dim = 16, 8, 40, 128  # small GSC-like shapes

    k_x, k_p = jax.random.split(key)
    # binary input spikes, then cast to float (matches input_spike.float())
    x_seq = (jax.random.uniform(k_x, (T, batch, input_dim)) < 0.3).astype(jnp.float32)

    w, bias, tau_m, tau_adp = init_params(k_p, input_dim, output_dim)
    mem0, spike0, b0 = set_neuron_state(batch, output_dim)

    # fused full-sequence kernel
    spike_seq, mem_f, b_f = spike_dense_sequence_forward(
        x_seq, w, bias, tau_m, tau_adp, mem0, spike0, b0)
    jax.block_until_ready((spike_seq, mem_f, b_f))

    # reference check over the whole sequence
    spike_ref, mem_ref, b_ref = _reference_sequence(
        x_seq, w, bias, tau_m, tau_adp, mem0, spike0, b0)
    assert jnp.allclose(spike_seq, spike_ref), "spike train mismatch"
    assert jnp.allclose(mem_f, mem_ref, atol=1e-4), "final mem mismatch"
    assert jnp.allclose(b_f, b_ref, atol=1e-5), "final b mismatch"

    # single-step wrapper (module-equivalent forward) sanity check
    mem1, spk1, b1 = spike_dense_forward(
        x_seq[0], w, bias, tau_m, tau_adp, mem0, spike0, b0)
    jax.block_until_ready((mem1, spk1, b1))
    spike_ref1, mem_ref1, b_ref1 = _reference_sequence(
        x_seq[:1], w, bias, tau_m, tau_adp, mem0, spike0, b0)
    assert jnp.allclose(spk1, spike_ref1[0])
    assert jnp.allclose(mem1, mem_ref1, atol=1e-5)
    assert jnp.allclose(b1, b_ref1, atol=1e-6)

    print("KERNEL_OK")
</pallas_src>

<mosaic_0001>
module attributes {stable_mosaic.version = 11 : i64} {
  func.func @_spike_dense_seq_kernel(%arg0: i32, %arg1: memref<1x8x40xf32, #tpu.memory_space<vmem>>, %arg2: memref<40x128xf32, #tpu.memory_space<vmem>>, %arg3: memref<1x128xf32, #tpu.memory_space<vmem>>, %arg4: memref<1x128xf32, #tpu.memory_space<vmem>>, %arg5: memref<1x128xf32, #tpu.memory_space<vmem>>, %arg6: memref<8x128xf32, #tpu.memory_space<vmem>>, %arg7: memref<8x128xf32, #tpu.memory_space<vmem>>, %arg8: memref<8x128xf32, #tpu.memory_space<vmem>>, %arg9: memref<1x8x128xf32, #tpu.memory_space<vmem>>, %arg10: memref<8x128xf32, #tpu.memory_space<vmem>>, %arg11: memref<8x128xf32, #tpu.memory_space<vmem>>, %arg12: memref<8x128xf32, #tpu.memory_space<vmem>>, %arg13: memref<8x128xf32, #tpu.memory_space<vmem>>, %arg14: memref<8x128xf32, #tpu.memory_space<vmem>>, %arg15: memref<1x128xf32, #tpu.memory_space<vmem>>, %arg16: memref<1x128xf32, #tpu.memory_space<vmem>>) attributes {dimension_semantics = [#tpu.dimension_semantics<arbitrary>], iteration_bounds = array<i64: 16>, scalar_prefetch = 0 : i64, scratch_operands = 5 : i64, tpu.core_type = #tpu.core_type<tc>, window_params = [{transform_indices = @transform_0, window_bounds = array<i64: 1, 8, 40>}, {pipeline_mode = #tpu.pipeline_mode<synchronous>, transform_indices = @transform_1, window_bounds = array<i64: 40, 128>}, {pipeline_mode = #tpu.pipeline_mode<synchronous>, transform_indices = @transform_2, window_bounds = array<i64: 1, 128>}, {pipeline_mode = #tpu.pipeline_mode<synchronous>, transform_indices = @transform_3, window_bounds = array<i64: 1, 128>}, {pipeline_mode = #tpu.pipeline_mode<synchronous>, transform_indices = @transform_4, window_bounds = array<i64: 1, 128>}, {pipeline_mode = #tpu.pipeline_mode<synchronous>, transform_indices = @transform_5, window_bounds = array<i64: 8, 128>}, {pipeline_mode = #tpu.pipeline_mode<synchronous>, transform_indices = @transform_6, window_bounds = array<i64: 8, 128>}, {pipeline_mode = #tpu.pipeline_mode<synchronous>, transform_indices = @transform_7, window_bounds = array<i64: 8, 128>}, {transform_indices = @transform_8, window_bounds = array<i64: 1, 8, 128>}, {pipeline_mode = #tpu.pipeline_mode<synchronous>, transform_indices = @transform_9, window_bounds = array<i64: 8, 128>}, {pipeline_mode = #tpu.pipeline_mode<synchronous>, transform_indices = @transform_10, window_bounds = array<i64: 8, 128>}]} {
    %c0_i32 = arith.constant 0 : i32
    %0 = arith.cmpi eq, %arg0, %c0_i32 : i32
    %1 = arith.extui %0 : i1 to i32
    %c0_i32_0 = arith.constant 0 : i32
    %2 = arith.cmpi ne, %1, %c0_i32_0 : i32
    scf.if %2 {
      %c0_34 = arith.constant 0 : index
      %c0_35 = arith.constant 0 : index
      %53 = vector.load %arg4[%c0_34, %c0_35] : memref<1x128xf32, #tpu.memory_space<vmem>>, vector<1x128xf32>
      %cst_36 = arith.constant -1.000000e+00 : f32
      %54 = vector.broadcast %cst_36 : f32 to vector<1x128xf32>
      %55 = arith.divf %54, %53 : vector<1x128xf32>
      %56 = math.exp %55 : vector<1x128xf32>
      %c0_37 = arith.constant 0 : index
      %c0_38 = arith.constant 0 : index
      %57 = vector.load %arg15[%c0_37, %c0_38] : memref<1x128xf32, #tpu.memory_space<vmem>>, vector<1x128xf32>
      tpu.vector_store %arg15[%c0_37, %c0_38], %56 {strides = array<i32>} : memref<1x128xf32, #tpu.memory_space<vmem>>, vector<1x128xf32>,
      %c0_39 = arith.constant 0 : index
      %c0_40 = arith.constant 0 : index
      %58 = vector.load %arg5[%c0_39, %c0_40] : memref<1x128xf32, #tpu.memory_space<vmem>>, vector<1x128xf32>
      %cst_41 = arith.constant -1.000000e+00 : f32
      %59 = vector.broadcast %cst_41 : f32 to vector<1x128xf32>
      %60 = arith.divf %59, %58 : vector<1x128xf32>
      %61 = math.exp %60 : vector<1x128xf32>
      %c0_42 = arith.constant 0 : index
      %c0_43 = arith.constant 0 : index
      %62 = vector.load %arg16[%c0_42, %c0_43] : memref<1x128xf32, #tpu.memory_space<vmem>>, vector<1x128xf32>
      tpu.vector_store %arg16[%c0_42, %c0_43], %61 {strides = array<i32>} : memref<1x128xf32, #tpu.memory_space<vmem>>, vector<1x128xf32>,
      %c0_44 = arith.constant 0 : index
      %c0_45 = arith.constant 0 : index
      %63 = vector.load %arg6[%c0_44, %c0_45] : memref<8x128xf32, #tpu.memory_space<vmem>>, vector<8x128xf32>
      %c0_46 = arith.constant 0 : index
      %c0_47 = arith.constant 0 : index
      %64 = vector.load %arg12[%c0_46, %c0_47] : memref<8x128xf32, #tpu.memory_space<vmem>>, vector<8x128xf32>
      tpu.vector_store %arg12[%c0_46, %c0_47], %63 {strides = array<i32>} : memref<8x128xf32, #tpu.memory_space<vmem>>, vector<8x128xf32>,
      %c0_48 = arith.constant 0 : index
      %c0_49 = arith.constant 0 : index
      %65 = vector.load %arg7[%c0_48, %c0_49] : memref<8x128xf32, #tpu.memory_space<vmem>>, vector<8x128xf32>
      %c0_50 = arith.constant 0 : index
      %c0_51 = arith.constant 0 : index
      %66 = vector.load %arg13[%c0_50, %c0_51] : memref<8x128xf32, #tpu.memory_space<vmem>>, vector<8x128xf32>
      tpu.vector_store %arg13[%c0_50, %c0_51], %65 {strides = array<i32>} : memref<8x128xf32, #tpu.memory_space<vmem>>, vector<8x128xf32>,
      %c0_52 = arith.constant 0 : index
      %c0_53 = arith.constant 0 : index
      %67 = vector.load %arg8[%c0_52, %c0_53] : memref<8x128xf32, #tpu.memory_space<vmem>>, vector<8x128xf32>
      %c0_54 = arith.constant 0 : index
      %c0_55 = arith.constant 0 : index
      %68 = vector.load %arg14[%c0_54, %c0_55] : memref<8x128xf32, #tpu.memory_space<vmem>>, vector<8x128xf32>
      tpu.vector_store %arg14[%c0_54, %c0_55], %67 {strides = array<i32>} : memref<8x128xf32, #tpu.memory_space<vmem>>, vector<8x128xf32>,
    } else {
    }
    %c0 = arith.constant 0 : index
    %c0_1 = arith.constant 0 : index
    %c0_2 = arith.constant 0 : index
    %3 = vector.load %arg1[%c0, %c0_1, %c0_2] : memref<1x8x40xf32, #tpu.memory_space<vmem>>, vector<1x8x40xf32>
    %4 = vector.shape_cast %3 : vector<1x8x40xf32> to vector<8x40xf32>
    %c0_3 = arith.constant 0 : index
    %c0_4 = arith.constant 0 : index
    %5 = vector.load %arg2[%c0_3, %c0_4] : memref<40x128xf32, #tpu.memory_space<vmem>>, vector<40x128xf32>
    %cst = arith.constant dense<0.000000e+00> : vector<8x128xf32>
    %6 = tpu.matmul %4, %5, %cst {dimension_numbers = #tpu.dot_dimension_numbers<[1], [0], [0], [1], [0, 0, 1, 1], [], []>} : vector<8x40xf32>, vector<40x128xf32>, vector<8x128xf32> -> vector<8x128xf32>
    %c0_5 = arith.constant 0 : index
    %c0_6 = arith.constant 0 : index
    %7 = vector.load %arg3[%c0_5, %c0_6] : memref<1x128xf32, #tpu.memory_space<vmem>>, vector<1x128xf32>
    %8 = vector.broadcast %7 : vector<1x128xf32> to vector<8x128xf32>
    %9 = arith.addf %6, %8 : vector<8x128xf32>
    %c0_7 = arith.constant 0 : index
    %c0_8 = arith.constant 0 : index
    %10 = vector.load %arg15[%c0_7, %c0_8] : memref<1x128xf32, #tpu.memory_space<vmem>>, vector<1x128xf32>
    %c0_9 = arith.constant 0 : index
    %c0_10 = arith.constant 0 : index
    %11 = vector.load %arg16[%c0_9, %c0_10] : memref<1x128xf32, #tpu.memory_space<vmem>>, vector<1x128xf32>
    %c0_11 = arith.constant 0 : index
    %c0_12 = arith.constant 0 : index
    %12 = vector.load %arg13[%c0_11, %c0_12] : memref<8x128xf32, #tpu.memory_space<vmem>>, vector<8x128xf32>
    %c0_13 = arith.constant 0 : index
    %c0_14 = arith.constant 0 : index
    %13 = vector.load %arg14[%c0_13, %c0_14] : memref<8x128xf32, #tpu.memory_space<vmem>>, vector<8x128xf32>
    %14 = vector.broadcast %11 : vector<1x128xf32> to vector<8x128xf32>
    %15 = arith.mulf %14, %13 : vector<8x128xf32>
    %cst_15 = arith.constant 1.000000e+00 : f32
    %16 = vector.broadcast %cst_15 : f32 to vector<1x128xf32>
    %17 = arith.subf %16, %11 : vector<1x128xf32>
    %18 = vector.broadcast %17 : vector<1x128xf32> to vector<8x128xf32>
    %19 = arith.mulf %18, %12 : vector<8x128xf32>
    %20 = arith.addf %15, %19 : vector<8x128xf32>
    %cst_16 = arith.constant 1.800000e+00 : f32
    %21 = vector.broadcast %cst_16 : f32 to vector<8x128xf32>
    %22 = arith.mulf %21, %20 : vector<8x128xf32>
    %cst_17 = arith.constant 0.00999999977 : f32
    %23 = vector.broadcast %cst_17 : f32 to vector<8x128xf32>
    %24 = arith.addf %23, %22 : vector<8x128xf32>
    %c0_18 = arith.constant 0 : index
    %c0_19 = arith.constant 0 : index
    %25 = vector.load %arg12[%c0_18, %c0_19] : memref<8x128xf32, #tpu.memory_space<vmem>>, vector<8x128xf32>
    %26 = vector.broadcast %10 : vector<1x128xf32> to vector<8x128xf32>
    %27 = arith.mulf %25, %26 : vector<8x128xf32>
    %cst_20 = arith.constant 1.000000e+00 : f32
    %28 = vector.broadcast %cst_20 : f32 to vector<1x128xf32>
    %29 = arith.subf %28, %10 : vector<1x128xf32>
    %cst_21 = arith.constant 1.000000e+00 : f32
    %30 = vector.broadcast %cst_21 : f32 to vector<1x128xf32>
    %31 = arith.mulf %29, %30 : vector<1x128xf32>
    %32 = vector.broadcast %31 : vector<1x128xf32> to vector<8x128xf32>
    %33 = arith.mulf %32, %9 : vector<8x128xf32>
    %34 = arith.addf %27, %33 : vector<8x128xf32>
    %35 = arith.mulf %24, %12 : vector<8x128xf32>
    %cst_22 = arith.constant 1.000000e+00 : f32
    %36 = vector.broadcast %cst_22 : f32 to vector<8x128xf32>
    %37 = arith.mulf %35, %36 : vector<8x128xf32>
    %38 = arith.subf %34, %37 : vector<8x128xf32>
    %39 = arith.subf %38, %24 : vector<8x128xf32>
    %cst_23 = arith.constant 0.000000e+00 : f32
    %40 = vector.broadcast %cst_23 : f32 to vector<8x128xf32>
    %41 = arith.cmpf ogt, %39, %40 : vector<8x128xf32>
    %42 = arith.extui %41 : vector<8x128xi1> to vector<8x128xi32>
    %43 = arith.sitofp %42 : vector<8x128xi32> to vector<8x128xf32>
    %c0_24 = arith.constant 0 : index
    %c0_25 = arith.constant 0 : index
    %44 = vector.load %arg12[%c0_24, %c0_25] : memref<8x128xf32, #tpu.memory_space<vmem>>, vector<8x128xf32>
    tpu.vector_store %arg12[%c0_24, %c0_25], %38 {strides = array<i32>} : memref<8x128xf32, #tpu.memory_space<vmem>>, vector<8x128xf32>,
    %c0_26 = arith.constant 0 : index
    %c0_27 = arith.constant 0 : index
    %45 = vector.load %arg14[%c0_26, %c0_27] : memref<8x128xf32, #tpu.memory_space<vmem>>, vector<8x128xf32>
    tpu.vector_store %arg14[%c0_26, %c0_27], %20 {strides = array<i32>} : memref<8x128xf32, #tpu.memory_space<vmem>>, vector<8x128xf32>,
    %c0_28 = arith.constant 0 : index
    %c0_29 = arith.constant 0 : index
    %46 = vector.load %arg13[%c0_28, %c0_29] : memref<8x128xf32, #tpu.memory_space<vmem>>, vector<8x128xf32>
    tpu.vector_store %arg13[%c0_28, %c0_29], %43 {strides = array<i32>} : memref<8x128xf32, #tpu.memory_space<vmem>>, vector<8x128xf32>,
    %c0_30 = arith.constant 0 : index
    %c0_31 = arith.constant 0 : index
    %c0_32 = arith.constant 0 : index
    %47 = vector.load %arg9[%c0_30, %c0_31, %c0_32] : memref<1x8x128xf32, #tpu.memory_space<vmem>>, vector<1x8x128xf32>
    %48 = vector.shape_cast %47 : vector<1x8x128xf32> to vector<8x128xf32>
    %49 = vector.shape_cast %43 : vector<8x128xf32> to vector<1x8x128xf32>
    tpu.vector_store %arg9[%c0_30, %c0_31, %c0_32], %49 {strides = array<i32>} : memref<1x8x128xf32, #tpu.memory_space<vmem>>, vector<1x8x128xf32>,
    %c15_i32 = arith.constant 15 : i32
    %50 = arith.cmpi eq, %arg0, %c15_i32 : i32
    %51 = arith.extui %50 : i1 to i32
    %c0_i32_33 = arith.constant 0 : i32
    %52 = arith.cmpi ne, %51, %c0_i32_33 : i32
    scf.if %52 {
      %c0_34 = arith.constant 0 : index
      %c0_35 = arith.constant 0 : index
      %53 = vector.load %arg10[%c0_34, %c0_35] : memref<8x128xf32, #tpu.memory_space<vmem>>, vector<8x128xf32>
      tpu.vector_store %arg10[%c0_34, %c0_35], %38 {strides = array<i32>} : memref<8x128xf32, #tpu.memory_space<vmem>>, vector<8x128xf32>,
      %c0_36 = arith.constant 0 : index
      %c0_37 = arith.constant 0 : index
      %54 = vector.load %arg11[%c0_36, %c0_37] : memref<8x128xf32, #tpu.memory_space<vmem>>, vector<8x128xf32>
      tpu.vector_store %arg11[%c0_36, %c0_37], %20 {strides = array<i32>} : memref<8x128xf32, #tpu.memory_space<vmem>>, vector<8x128xf32>,
    } else {
    }
    return
  }
  func.func @transform_0(%arg0: i32) -> (i32, i32, i32) {
    %c0_i32 = arith.constant 0 : i32
    %c0_i32_0 = arith.constant 0 : i32
    %c0_i32_1 = arith.constant 0 : i32
    return %arg0, %c0_i32, %c0_i32_0 : i32, i32, i32
  }
  func.func @transform_1(%arg0: i32) -> (i32, i32) {
    %c0_i32 = arith.constant 0 : i32
    %c0_i32_0 = arith.constant 0 : i32
    %c0_i32_1 = arith.constant 0 : i32
    return %c0_i32, %c0_i32_0 : i32, i32
  }
  func.func @transform_2(%arg0: i32) -> (i32, i32) {
    %c0_i32 = arith.constant 0 : i32
    %c0_i32_0 = arith.constant 0 : i32
    %c0_i32_1 = arith.constant 0 : i32
    return %c0_i32, %c0_i32_0 : i32, i32
  }
  func.func @transform_3(%arg0: i32) -> (i32, i32) {
    %c0_i32 = arith.constant 0 : i32
    %c0_i32_0 = arith.constant 0 : i32
    %c0_i32_1 = arith.constant 0 : i32
    return %c0_i32, %c0_i32_0 : i32, i32
  }
  func.func @transform_4(%arg0: i32) -> (i32, i32) {
    %c0_i32 = arith.constant 0 : i32
    %c0_i32_0 = arith.constant 0 : i32
    %c0_i32_1 = arith.constant 0 : i32
    return %c0_i32, %c0_i32_0 : i32, i32
  }
  func.func @transform_5(%arg0: i32) -> (i32, i32) {
    %c0_i32 = arith.constant 0 : i32
    %c0_i32_0 = arith.constant 0 : i32
    %c0_i32_1 = arith.constant 0 : i32
    return %c0_i32, %c0_i32_0 : i32, i32
  }
  func.func @transform_6(%arg0: i32) -> (i32, i32) {
    %c0_i32 = arith.constant 0 : i32
    %c0_i32_0 = arith.constant 0 : i32
    %c0_i32_1 = arith.constant 0 : i32
    return %c0_i32, %c0_i32_0 : i32, i32
  }
  func.func @transform_7(%arg0: i32) -> (i32, i32) {
    %c0_i32 = arith.constant 0 : i32
    %c0_i32_0 = arith.constant 0 : i32
    %c0_i32_1 = arith.constant 0 : i32
    return %c0_i32, %c0_i32_0 : i32, i32
  }
  func.func @transform_8(%arg0: i32) -> (i32, i32, i32) {
    %c0_i32 = arith.constant 0 : i32
    %c0_i32_0 = arith.constant 0 : i32
    %c0_i32_1 = arith.constant 0 : i32
    return %arg0, %c0_i32, %c0_i32_0 : i32, i32, i32
  }
  func.func @transform_9(%arg0: i32) -> (i32, i32) {
    %c0_i32 = arith.constant 0 : i32
    %c0_i32_0 = arith.constant 0 : i32
    %c0_i32_1 = arith.constant 0 : i32
    return %c0_i32, %c0_i32_0 : i32, i32
  }
  func.func @transform_10(%arg0: i32) -> (i32, i32) {
    %c0_i32 = arith.constant 0 : i32
    %c0_i32_0 = arith.constant 0 : i32
    %c0_i32_1 = arith.constant 0 : i32
    return %c0_i32, %c0_i32_0 : i32, i32
  }
}

</mosaic_0001>

<llo_original>
// kernel: tpu_custom_call.1
$region0: #{tpu_custom_call.1}
  #allocation0 [shape = 'u32[]', space=smem, size = 0x4, offset = 0x4, fixed_abs, tag = 'smem constant byte address 0x4 - core index']
  #allocation1 [shape = 'u32[144,128]{1,0:T(1,128)}', space=vmem, size = 0x12000, scoped, tag = 'internal scratch']
  #allocation2 [shape = 'f32[8,128]{1,0:T(8,128)}', space=vmem, size = 0x1000, scoped, tag = 'scratch operand']
  #allocation3 [shape = 'f32[8,128]{1,0:T(8,128)}', space=vmem, size = 0x1000, scoped, tag = 'scratch operand']
  #allocation4 [shape = 'f32[8,128]{1,0:T(8,128)}', space=vmem, size = 0x1000, scoped, tag = 'scratch operand']
  #allocation5 [shape = 'f32[1,128]{1,0:T(1,128)}', space=vmem, size = 0x200, scoped, tag = 'scratch operand']
  #allocation6 [shape = 'f32[1,128]{1,0:T(1,128)}', space=vmem, size = 0x200, scoped, tag = 'scratch operand']
  %s0 = inlined_call_operand.hbm [shape: f32[16,8,40], index: 0, kind: input, shape index: {}]
  %s1 = inlined_call_operand.hbm [shape: f32[40,128], index: 1, kind: input, shape index: {}]
  %s2 = inlined_call_operand.vmem [shape: f32[1,128], index: 2, kind: input, shape index: {}]
  %s3 = inlined_call_operand.vmem [shape: f32[1,128], index: 3, kind: input, shape index: {}]
  %s4 = inlined_call_operand.hbm [shape: f32[1,128], index: 4, kind: input, shape index: {}]
  %s5 = inlined_call_operand.vmem [shape: f32[8,128], index: 5, kind: input, shape index: {}]
  %s6 = inlined_call_operand.vmem [shape: f32[8,128], index: 6, kind: input, shape index: {}]
  %s7 = inlined_call_operand.vmem [shape: f32[8,128], index: 7, kind: input, shape index: {}]
  %s8 = inlined_call_operand.hbm [shape: f32[16,8,128], index: 8, kind: output, shape index: {0}]
  %s9 = inlined_call_operand.hbm [shape: f32[8,128], index: 9, kind: output, shape index: {1}]
  %s10 = inlined_call_operand.hbm [shape: f32[8,128], index: 10, kind: output, shape index: {2}]
  %11 = xla_tuple %s8, %s9, %s10
  %s12 = sld [smem:[#allocation0]]
  $region101: #{tpu_custom_call.1} parent=0
    _
  %s14 = ssub.s32 1, %s12
  %s15 = scalar_select 0, %s14, %s12
  $region1: #{tpu_custom_call.1} parent=0
    #allocation7 [shape = 'u8[8192]{0}', space=vmem, size = 0x2000, scoped, tag = 'input window, operand 0']
    #allocation8 [shape = 's32[2]{0}', space=sflag, size = 0x8, scoped, tag = 'scoped memory for tpu_custom_call.1']
    #allocation9 [shape = 's32[2]{0}', space=sflag, size = 0x8, scoped, tag = 'scoped memory for tpu_custom_call.1']
    #allocation10 [shape = 'u8[20480]{0}', space=vmem, size = 0x5000, scoped, tag = 'input window, operand 1, single buffered']
    #allocation11 [shape = 's32[1]{0}', space=sflag, size = 0x4, scoped, tag = 'scoped memory for tpu_custom_call.1']
    #allocation12 [shape = 'u8[512]{0}', space=vmem, size = 0x400, scoped, tag = 'input window, operand 4, single buffered']
    #allocation13 [shape = 'u8[8192]{0}', space=vmem, size = 0x2000, scoped, tag = 'output window, operand 0']
    #allocation14 [shape = 'u8[4096]{0}', space=vmem, size = 0x1000, scoped, tag = 'output window, operand 1, single buffered']
    #allocation15 [shape = 's32[1]{0}', space=sflag, size = 0x4, scoped, tag = 'scoped memory for tpu_custom_call.1']
    #allocation16 [shape = 'u8[4096]{0}', space=vmem, size = 0x1000, scoped, tag = 'output window, operand 2, single buffered']
    %16 = vsyncpa [#allocation8], 0
    %s17 = scalar_lea.sflag [#allocation8], 1
    %18 = vsyncpa %s17, 0
    %19 = vsyncpa [#allocation11], 0
    %20 = vsyncpa [#allocation9], 0
    %s21 = scalar_lea.sflag [#allocation9], 1
    %22 = vsyncpa %s21, 0
    %23 = vsyncpa [#allocation15], 0
    loop: start=0, step=1, limit=18
    $region2: #{tpu_custom_call.1} parent=1 // loop_pre_header
      _
    $region3: #{tpu_custom_call.1} parent=1 // loop_header
      %s25 = sphi 0, %s29
      %p26 = scmp.ge.s32.totalorder %s25, 18
      %s35 = sphi 0, %s37
      %s38 = sphi 0, %s35
      %s39 = sphi 0, %s38
      %s55 = sphi 0, %s39
      %s59 = sphi 0, %s59
      %s61 = sphi 0, %s59
      %s62 = sphi 0, %s61
      %s76 = sphi 0, %s62
      %s80 = sphi 0, %s80
      %s82 = sphi 0, %s80
      %s83 = sphi 0, %s82
      %s97 = sphi 0, %s83
      %s101 = sphi 0, %s101
      %s103 = sphi 0, %s101
      %s104 = sphi 0, %s103
      %s118 = sphi 0, %s104
      %s122 = sphi 0, %s122
      %s124 = sphi 0, %s122
      %s125 = sphi 0, %s124
      %s139 = sphi 0, %s125
      %s143 = sphi 0, %s143
      %s145 = sphi 0, %s143
      %s146 = sphi 0, %s145
      %s160 = sphi 0, %s146
      %s164 = sphi 0, %s164
      %s166 = sphi 0, %s164
      %s167 = sphi 0, %s166
      %s181 = sphi 0, %s167
      %s185 = sphi 0, %s185
      %s187 = sphi 0, %s185
      %s188 = sphi 0, %s187
      %s202 = sphi 0, %s188
      %s208 = sphi 0, %s210
      %s211 = sphi 0, %s208
      %s212 = sphi 0, %s211
      %s228 = sphi 0, %s212
      %s232 = sphi 0, %s232
      %s234 = sphi 0, %s232
      %s235 = sphi 0, %s234
      %s249 = sphi 0, %s235
      %s253 = sphi 0, %s253
      %s255 = sphi 0, %s253
      %s256 = sphi 0, %s255
      %s270 = sphi 0, %s256
    $region4: #{tpu_custom_call.1} parent=1 // loop_header_branch
      %28 = sbr.rel (%p26) target = $region8
    $region5: #{tpu_custom_call.1} parent=1 // loop_body
      %s30 = ssub.s32 %s25, 1
      %s31 = ssub.s32 %s25, 2
      %s32 = sadd.s32 %s25, 1
      %s33 = ssub.s32 %s25, %s32
      %p34 = scmp.eq.s32.totalorder %s33, 0
      %s36 = sadd.s32 %s35, 1
      %s37 = scalar_select %p34, %s35, %s36
      %p40 = pneg %p34
      %p41 = scmp.eq.s32.totalorder %s25, 15
      %p42 = por %p40, %p41
      %p43 = scmp.ne.s32.totalorder %s35, %s38
      %p44 = scmp.eq.s32.totalorder %s25, 0
      %p45 = por %p43, %p44
      %p46 = scmp.ne.s32.totalorder %s35, %s38
      %p47 = scmp.eq.s32.totalorder %s30, 15
      %p48 = por %p46, %p47
      %p49 = scmp.ne.s32.totalorder %s38, %s39
      %p50 = scmp.eq.s32.totalorder %s30, 0
      %p51 = por %p49, %p50
      %p52 = scmp.ne.s32.totalorder %s38, %s39
      %p53 = scmp.eq.s32.totalorder %s31, 15
      %p54 = por %p52, %p53
      %p56 = scmp.ne.s32.totalorder %s39, %s55
      %p57 = scmp.eq.s32.totalorder %s31, 0
      %p58 = por %p56, %p57
      %s60 = sadd.s32 %s59, 1
      %p63 = scmp.eq.s32.totalorder %s25, 15
      %p64 = scmp.ne.s32.totalorder %s59, %s61
      %p65 = scmp.eq.s32.totalorder %s25, 0
      %p66 = por %p64, %p65
      %p67 = scmp.ne.s32.totalorder %s59, %s61
      %p68 = scmp.eq.s32.totalorder %s30, 15
      %p69 = por %p67, %p68
      %p70 = scmp.ne.s32.totalorder %s61, %s62
      %p71 = scmp.eq.s32.totalorder %s30, 0
      %p72 = por %p70, %p71
      %p73 = scmp.ne.s32.totalorder %s61, %s62
      %p74 = scmp.eq.s32.totalorder %s31, 15
      %p75 = por %p73, %p74
      %p77 = scmp.ne.s32.totalorder %s62, %s76
      %p78 = scmp.eq.s32.totalorder %s31, 0
      %p79 = por %p77, %p78
      %s81 = sadd.s32 %s80, 1
      %p84 = scmp.eq.s32.totalorder %s25, 15
      %p85 = scmp.ne.s32.totalorder %s80, %s82
      %p86 = scmp.eq.s32.totalorder %s25, 0
      %p87 = por %p85, %p86
      %p88 = scmp.ne.s32.totalorder %s80, %s82
      %p89 = scmp.eq.s32.totalorder %s30, 15
      %p90 = por %p88, %p89
      %p91 = scmp.ne.s32.totalorder %s82, %s83
      %p92 = scmp.eq.s32.totalorder %s30, 0
      %p93 = por %p91, %p92
      %p94 = scmp.ne.s32.totalorder %s82, %s83
      %p95 = scmp.eq.s32.totalorder %s31, 15
      %p96 = por %p94, %p95
      %p98 = scmp.ne.s32.totalorder %s83, %s97
      %p99 = scmp.eq.s32.totalorder %s31, 0
      %p100 = por %p98, %p99
      %s102 = sadd.s32 %s101, 1
      %p105 = scmp.eq.s32.totalorder %s25, 15
      %p106 = scmp.ne.s32.totalorder %s101, %s103
      %p107 = scmp.eq.s32.totalorder %s25, 0
      %p108 = por %p106, %p107
      %p109 = scmp.ne.s32.totalorder %s101, %s103
      %p110 = scmp.eq.s32.totalorder %s30, 15
      %p111 = por %p109, %p110
      %p112 = scmp.ne.s32.totalorder %s103, %s104
      %p113 = scmp.eq.s32.totalorder %s30, 0
      %p114 = por %p112, %p113
      %p115 = scmp.ne.s32.totalorder %s103, %s104
      %p116 = scmp.eq.s32.totalorder %s31, 15
      %p117 = por %p115, %p116
      %p119 = scmp.ne.s32.totalorder %s104, %s118
      %p120 = scmp.eq.s32.totalorder %s31, 0
      %p121 = por %p119, %p120
      %s123 = sadd.s32 %s122, 1
      %p126 = scmp.eq.s32.totalorder %s25, 15
      %p127 = scmp.ne.s32.totalorder %s122, %s124
      %p128 = scmp.eq.s32.totalorder %s25, 0
      %p129 = por %p127, %p128
      %p130 = scmp.ne.s32.totalorder %s122, %s124
      %p131 = scmp.eq.s32.totalorder %s30, 15
      %p132 = por %p130, %p131
      %p133 = scmp.ne.s32.totalorder %s124, %s125
      %p134 = scmp.eq.s32.totalorder %s30, 0
      %p135 = por %p133, %p134
      %p136 = scmp.ne.s32.totalorder %s124, %s125
      %p137 = scmp.eq.s32.totalorder %s31, 15
      %p138 = por %p136, %p137
      %p140 = scmp.ne.s32.totalorder %s125, %s139
      %p141 = scmp.eq.s32.totalorder %s31, 0
      %p142 = por %p140, %p141
      %s144 = sadd.s32 %s143, 1
      %p147 = scmp.eq.s32.totalorder %s25, 15
      %p148 = scmp.ne.s32.totalorder %s143, %s145
      %p149 = scmp.eq.s32.totalorder %s25, 0
      %p150 = por %p148, %p149
      %p151 = scmp.ne.s32.totalorder %s143, %s145
      %p152 = scmp.eq.s32.totalorder %s30, 15
      %p153 = por %p151, %p152
      %p154 = scmp.ne.s32.totalorder %s145, %s146
      %p155 = scmp.eq.s32.totalorder %s30, 0
      %p156 = por %p154, %p155
      %p157 = scmp.ne.s32.totalorder %s145, %s146
      %p158 = scmp.eq.s32.totalorder %s31, 15
      %p159 = por %p157, %p158
      %p161 = scmp.ne.s32.totalorder %s146, %s160
      %p162 = scmp.eq.s32.totalorder %s31, 0
      %p163 = por %p161, %p162
      %s165 = sadd.s32 %s164, 1
      %p168 = scmp.eq.s32.totalorder %s25, 15
      %p169 = scmp.ne.s32.totalorder %s164, %s166
      %p170 = scmp.eq.s32.totalorder %s25, 0
      %p171 = por %p169, %p170
      %p172 = scmp.ne.s32.totalorder %s164, %s166
      %p173 = scmp.eq.s32.totalorder %s30, 15
      %p174 = por %p172, %p173
      %p175 = scmp.ne.s32.totalorder %s166, %s167
      %p176 = scmp.eq.s32.totalorder %s30, 0
      %p177 = por %p175, %p176
      %p178 = scmp.ne.s32.totalorder %s166, %s167
      %p179 = scmp.eq.s32.totalorder %s31, 15
      %p180 = por %p178, %p179
      %p182 = scmp.ne.s32.totalorder %s167, %s181
      %p183 = scmp.eq.s32.totalorder %s31, 0
      %p184 = por %p182, %p183
      %s186 = sadd.s32 %s185, 1
      %p189 = scmp.eq.s32.totalorder %s25, 15
      %p190 = scmp.ne.s32.totalorder %s185, %s187
      %p191 = scmp.eq.s32.totalorder %s25, 0
      %p192 = por %p190, %p191
      %p193 = scmp.ne.s32.totalorder %s185, %s187
      %p194 = scmp.eq.s32.totalorder %s30, 15
      %p195 = por %p193, %p194
      %p196 = scmp.ne.s32.totalorder %s187, %s188
      %p197 = scmp.eq.s32.totalorder %s30, 0
      %p198 = por %p196, %p197
      %p199 = scmp.ne.s32.totalorder %s187, %s188
      %p200 = scmp.eq.s32.totalorder %s31, 15
      %p201 = por %p199, %p200
      %p203 = scmp.ne.s32.totalorder %s188, %s202
      %p204 = scmp.eq.s32.totalorder %s31, 0
      %p205 = por %p203, %p204
      %s206 = ssub.s32 %s25, %s32
      %p207 = scmp.eq.s32.totalorder %s206, 0
      %s209 = sadd.s32 %s208, 1
      %s210 = scalar_select %p207, %s208, %s209
      %p213 = pneg %p207
      %p214 = scmp.eq.s32.totalorder %s25, 15
      %p215 = por %p213, %p214
      %p216 = scmp.ne.s32.totalorder %s208, %s211
      %p217 = scmp.eq.s32.totalorder %s25, 0
      %p218 = por %p216, %p217
      %p219 = scmp.ne.s32.totalorder %s208, %s211
      %p220 = scmp.eq.s32.totalorder %s30, 15
      %p221 = por %p219, %p220
      %p222 = scmp.ne.s32.totalorder %s211, %s212
      %p223 = scmp.eq.s32.totalorder %s30, 0
      %p224 = por %p222, %p223
      %p225 = scmp.ne.s32.totalorder %s211, %s212
      %p226 = scmp.eq.s32.totalorder %s31, 15
      %p227 = por %p225, %p226
      %p229 = scmp.ne.s32.totalorder %s212, %s228
      %p230 = scmp.eq.s32.totalorder %s31, 0
      %p231 = por %p229, %p230
      %s233 = sadd.s32 %s232, 1
      %p236 = scmp.eq.s32.totalorder %s25, 15
      %p237 = scmp.ne.s32.totalorder %s232, %s234
      %p238 = scmp.eq.s32.totalorder %s25, 0
      %p239 = por %p237, %p238
      %p240 = scmp.ne.s32.totalorder %s232, %s234
      %p241 = scmp.eq.s32.totalorder %s30, 15
      %p242 = por %p240, %p241
      %p243 = scmp.ne.s32.totalorder %s234, %s235
      %p244 = scmp.eq.s32.totalorder %s30, 0
      %p245 = por %p243, %p244
      %p246 = scmp.ne.s32.totalorder %s234, %s235
      %p247 = scmp.eq.s32.totalorder %s31, 15
      %p248 = por %p246, %p247
      %p250 = scmp.ne.s32.totalorder %s235, %s249
      %p251 = scmp.eq.s32.totalorder %s31, 0
      %p252 = por %p250, %p251
      %s254 = sadd.s32 %s253, 1
      %p257 = scmp.eq.s32.totalorder %s25, 15
      %p258 = scmp.ne.s32.totalorder %s253, %s255
      %p259 = scmp.eq.s32.totalorder %s25, 0
      %p260 = por %p258, %p259
      %p261 = scmp.ne.s32.totalorder %s253, %s255
      %p262 = scmp.eq.s32.totalorder %s30, 15
      %p263 = por %p261, %p262
      %p264 = scmp.ne.s32.totalorder %s255, %s256
      %p265 = scmp.eq.s32.totalorder %s30, 0
      %p266 = por %p264, %p265
      %p267 = scmp.ne.s32.totalorder %s255, %s256
      %p268 = scmp.eq.s32.totalorder %s31, 15
      %p269 = por %p267, %p268
      %p271 = scmp.ne.s32.totalorder %s256, %s270
      %p272 = scmp.eq.s32.totalorder %s31, 0
      %p273 = por %p271, %p272
      %p274 = scmp.le.s32.totalorder 1, %s25
      %p275 = scmp.lt.s32.totalorder %s25, 17
      %p276 = pnand %p274, %p275
      %p277 = pneg %p276
      // Predicated region
      $region9: #{tpu_custom_call.1} parent=5 // pred_check
        _
      $region10: #{tpu_custom_call.1} parent=5 // pred_check_branch
        %279 = sbr.rel (%p276) target = $region12
      $region11: #{tpu_custom_call.1} parent=5 // pred_region
        %s280 = ssub.s32 %s25, 1
        // Predicated region
        $region13: #{tpu_custom_call.1} parent=11 // pred_check
          %p281 = pneg %p72
        $region14: #{tpu_custom_call.1} parent=11 // pred_check_branch
          %283 = sbr.rel (%p281) target = $region16
        $region15: #{tpu_custom_call.1} parent=11 // pred_region
          %s285 = ssub.s32 640, 640
          %286 = vsyncadd [#allocation11], %s285
          %s287 = sshll.u32 [#allocation10], 4
          %s288 = int_to_ptr.vmem [resolvable:$true] %s287
          %293 = dma.hbm_to_vmem [thread:$0]  %s1, 640, %s288, [#allocation11], 128, 128, 8
        $region16: #{tpu_custom_call.1} parent=11 // pred_fallthru
          _
        // Predicated region
        $region17: #{tpu_custom_call.1} parent=11 // pred_check
          %p294 = pneg %p93
        $region18: #{tpu_custom_call.1} parent=11 // pred_check_branch
          %296 = sbr.rel (%p294) target = $region20
        $region19: #{tpu_custom_call.1} parent=11 // pred_region
          _
        $region20: #{tpu_custom_call.1} parent=11 // pred_fallthru
          _
        // Predicated region
        $region21: #{tpu_custom_call.1} parent=11 // pred_check
          %p297 = pneg %p114
        $region22: #{tpu_custom_call.1} parent=11 // pred_check_branch
          %299 = sbr.rel (%p297) target = $region24
        $region23: #{tpu_custom_call.1} parent=11 // pred_region
          _
        $region24: #{tpu_custom_call.1} parent=11 // pred_fallthru
          _
        // Predicated region
        $region25: #{tpu_custom_call.1} parent=11 // pred_check
          %p300 = pneg %p135
        $region26: #{tpu_custom_call.1} parent=11 // pred_check_branch
          %302 = sbr.rel (%p300) target = $region28
        $region27: #{tpu_custom_call.1} parent=11 // pred_region
          %s304 = ssub.s32 16, 16
          %305 = vsyncadd [#allocation11], %s304
          %s307 = sshll.u32 [#allocation12], 4
          %s308 = int_to_ptr.vmem [resolvable:$true] %s307
          %310 = dma.hbm_to_vmem [thread:$0]  %s4, 16, %s308, [#allocation11]
        $region28: #{tpu_custom_call.1} parent=11 // pred_fallthru
          _
        // Predicated region
        $region29: #{tpu_custom_call.1} parent=11 // pred_check
          %p311 = pneg %p156
        $region30: #{tpu_custom_call.1} parent=11 // pred_check_branch
          %313 = sbr.rel (%p311) target = $region32
        $region31: #{tpu_custom_call.1} parent=11 // pred_region
          _
        $region32: #{tpu_custom_call.1} parent=11 // pred_fallthru
          _
        // Predicated region
        $region33: #{tpu_custom_call.1} parent=11 // pred_check
          %p314 = pneg %p177
        $region34: #{tpu_custom_call.1} parent=11 // pred_check_branch
          %316 = sbr.rel (%p314) target = $region36
        $region35: #{tpu_custom_call.1} parent=11 // pred_region
          _
        $region36: #{tpu_custom_call.1} parent=11 // pred_fallthru
          _
        // Predicated region
        $region37: #{tpu_custom_call.1} parent=11 // pred_check
          %p317 = pneg %p198
        $region38: #{tpu_custom_call.1} parent=11 // pred_check_branch
          %319 = sbr.rel (%p317) target = $region40
        $region39: #{tpu_custom_call.1} parent=11 // pred_region
          _
        $region40: #{tpu_custom_call.1} parent=11 // pred_fallthru
          _
      $region12: #{tpu_custom_call.1} parent=5 // pred_fallthru
        _
      %p320 = scmp.lt.s32.totalorder %s25, 16
      // Predicated region
      $region41: #{tpu_custom_call.1} parent=5 // pred_check
        %p321 = pneg %p320
      $region42: #{tpu_custom_call.1} parent=5 // pred_check_branch
        %323 = sbr.rel (%p321) target = $region44
      $region43: #{tpu_custom_call.1} parent=5 // pred_region
        // Predicated region
        $region45: #{tpu_custom_call.1} parent=43 // pred_check
          %p324 = pneg %p45
        $region46: #{tpu_custom_call.1} parent=43 // pred_check_branch
          %326 = sbr.rel (%p324) target = $region48
        $region47: #{tpu_custom_call.1} parent=43 // pred_region
          %s327 = sand.u32 %s35, 1
          %s328 = scalar_lea.sflag [#allocation8], %s327
          %s329 = sand.u32 %s35, 1
          %s330 = smul.addr %s329, 8
          %s331 = scalar_lea.vmem [#allocation7], %s330
          %s333 = ssub.s32 128, 128
          %334 = vsyncadd %s328, %s333
          %s335 = smul.addr %s25, 128
          %s336 = scalar_lea.hbm %s0, %s335
          %s338 = sshll.u32 %s331, 4
          %s339 = int_to_ptr.vmem [resolvable:$true] %s338
          %341 = dma.hbm_to_vmem [thread:$0]  %s336, 128, %s339, %s328
        $region48: #{tpu_custom_call.1} parent=43 // pred_fallthru
          _
      $region44: #{tpu_custom_call.1} parent=5 // pred_fallthru
        _
      %p342 = scmp.le.s32.totalorder 1, %s25
      %p343 = scmp.lt.s32.totalorder %s25, 17
      %p344 = pnand %p342, %p343
      %p345 = pneg %p344
      // Predicated region
      $region49: #{tpu_custom_call.1} parent=5 // pred_check
        _
      $region50: #{tpu_custom_call.1} parent=5 // pred_check_branch
        %347 = sbr.rel (%p344) target = $region52
      $region51: #{tpu_custom_call.1} parent=5 // pred_region
        %s348 = ssub.s32 %s25, 1
        %s349 = sand.u32 %s38, 1
        %s350 = scalar_lea.sflag [#allocation8], %s349
        %s351 = sand.u32 %s38, 1
        %s352 = smul.addr %s351, 8
        %s353 = scalar_lea.vmem [#allocation7], %s352
        // Predicated region
        $region53: #{tpu_custom_call.1} parent=51 // pred_check
          %p354 = pneg %p51
        $region54: #{tpu_custom_call.1} parent=51 // pred_check_branch
          %356 = sbr.rel (%p354) target = $region56
        $region55: #{tpu_custom_call.1} parent=51 // pred_region
          %357 = dma.done %s350, 128
        $region56: #{tpu_custom_call.1} parent=51 // pred_fallthru
          _
        // Predicated region
        $region57: #{tpu_custom_call.1} parent=51 // pred_check
          %p358 = pneg %p72
        $region58: #{tpu_custom_call.1} parent=51 // pred_check_branch
          %360 = sbr.rel (%p358) target = $region60
        $region59: #{tpu_custom_call.1} parent=51 // pred_region
          %361 = dma.done [#allocation11], 640
        $region60: #{tpu_custom_call.1} parent=51 // pred_fallthru
          _
        // Predicated region
        $region61: #{tpu_custom_call.1} parent=51 // pred_check
          %p362 = pneg %p135
        $region62: #{tpu_custom_call.1} parent=51 // pred_check_branch
          %364 = sbr.rel (%p362) target = $region64
        $region63: #{tpu_custom_call.1} parent=51 // pred_region
          %365 = dma.done [#allocation11], 16
        $region64: #{tpu_custom_call.1} parent=51 // pred_fallthru
          _
        %s366 = sand.u32 %s38, 1
        %s367 = scalar_lea.sflag [#allocation8], %s366
        %s368 = sand.u32 %s38, 1
        %s369 = smul.addr %s368, 8
        %s370 = scalar_lea.vmem [#allocation7], %s369
        %p371 = pneg %p51
        %p372 = pneg %p48
        %p373 = pneg %p72
        %p374 = pneg %p69
        %p375 = pneg %p93
        %p376 = pneg %p90
        %p377 = pneg %p114
        %p378 = pneg %p111
        %p379 = pneg %p135
        %p380 = pneg %p132
        %p381 = pneg %p156
        %p382 = pneg %p153
        %p383 = pneg %p177
        %p384 = pneg %p174
        %p385 = pneg %p198
        %p386 = pneg %p195
        %p387 = pneg %p224
        %p388 = pneg %p221
        %s389 = sand.u32 %s211, 1
        %s390 = scalar_lea.sflag [#allocation9], %s389
        %s391 = sand.u32 %s211, 1
        %s392 = smul.addr %s391, 8
        %s393 = scalar_lea.vmem [#allocation13], %s392
        %p394 = pneg %p245
        %p395 = pneg %p242
        %p396 = pneg %p266
        %p397 = pneg %p263
        %p398 = scmp.eq.s32.totalorder %s30, 0
        // Predicated region
        $region65: #{tpu_custom_call.1} parent=51 // pred_check
          %p399 = pneg %p398
        $region66: #{tpu_custom_call.1} parent=51 // pred_check_branch
          %401 = sbr.rel (%p399) target = $region68
        $region67: #{tpu_custom_call.1} parent=51 // pred_region
          %v402 = vld [vmem:[%s3] sm:$0x1]
          %v403 = vrcp.pop %v402
          %v404 = vmul.f32 -1.0, %v403
          %v405 = vmul.f32 %v404, 1.442695
          %v406 = vpow.pop %v405
          %407 = vst [vmem:[#allocation5] sm:$0x1] %v406
          %v408 = vld [vmem:[#allocation12] sm:$0x1]
          %v409 = vrcp.pop %v408
          %v410 = vmul.f32 -1.0, %v409
          %v411 = vmul.f32 %v410, 1.442695
          %v412 = vpow.pop %v411
          %413 = vst [vmem:[#allocation6] sm:$0x1] %v412
          %v414 = vld [vmem:[%s5] sm:$0xff]
          %415 = vst [vmem:[#allocation2] sm:$0xff] %v414
          %v416 = vld [vmem:[%s6] sm:$0xff]
          %417 = vst [vmem:[#allocation3] sm:$0xff] %v416
          %v418 = vld [vmem:[%s7] sm:$0xff]
          %419 = vst [vmem:[#allocation4] sm:$0xff] %v418
        $region68: #{tpu_custom_call.1} parent=51 // pred_fallthru
          _
        %v420 = vld [vmem:[%s353] sm:$0xff]
        %v421 = vld [vmem:[#allocation10] sm:$0xff]
        %v422 = vld [vmem:[#allocation10 + $0x8] sm:$0xff]
        %v423 = vld [vmem:[#allocation10 + $0x10] sm:$0xff]
        %v424 = vld [vmem:[#allocation10 + $0x18] sm:$0xff]
        %v425 = vld [vmem:[#allocation10 + $0x20] sm:$0xff]
        %v426 = vld [vmem:[%s2] sm:$0x1]
        %v428 = vlaneseq
        %v429 = vshrl.u32 %v428, 7
        %v430 = vsub.s32 0, %v429
        %v431 = vrot.slane %v426, %v430
        %vm433 = vcmask 326656
        %v435 = vsel %vm433, %v420, 0
        %437 = vmatprep.subr.mxu0 0.0
        %438 = vmatpush1.msra.mxu0 %v421
        %439 = vmatprep.subr.mxu0 0.0
        %440 = vmatpush1.msra.mxu0 %v422
        %441 = vmatprep.subr.mxu0 0.0
        %442 = vmatpush1.msra.mxu0 %v423
        %443 = vmatprep.subr.mxu0 0.0
        %444 = vmatpush1.msra.mxu0 %v424
        %445 = vmatprep.subr.mxu0 0.0
        %446 = vmatpush1.msra.mxu0 %v425
        %447 = vmatprep.subr.mxu0 0.0
        %448 = vmatpush1.msra.mxu0 0.0
        %449 = vmatprep.subr.mxu0 0.0
        %450 = vmatpush1.msra.mxu0 0.0
        %451 = vmatprep.subr.mxu0 0.0
        %452 = vmatpush1.msra.mxu0 0.0
        %453 = vmatprep.subr.mxu0 0.0
        %454 = vmatpush1.msra.mxu0 0.0
        %455 = vmatprep.subr.mxu0 0.0
        %456 = vmatpush1.msra.mxu0 0.0
        %457 = vmatprep.subr.mxu0 0.0
        %458 = vmatpush1.msra.mxu0 0.0
        %459 = vmatprep.subr.mxu0 0.0
        %460 = vmatpush1.msra.mxu0 0.0
        %461 = vmatprep.subr.mxu0 0.0
        %462 = vmatpush1.msra.mxu0 0.0
        %463 = vmatprep.subr.mxu0 0.0
        %464 = vmatpush1.msra.mxu0 0.0
        %465 = vmatprep.subr.mxu0 0.0
        %466 = vmatpush1.msra.mxu0 0.0
        %467 = vmatprep.subr.mxu0 0.0
        %468 = vmatpush1.msra.mxu0 0.0
        %469 = vmatprep.subr.mxu0 0.0
        %470 = vmatpush1.msra.mxu0 0.0
        %471 = vmatprep.subr.mxu0 0.0
        %472 = vmatpush1.msra.mxu0 0.0
        %473 = vmatprep.subr.mxu0 0.0
        %474 = vmatpush1.msra.mxu0 0.0
        %475 = vmatprep.subr.mxu0 0.0
        %476 = vmatpush1.msra.mxu0 0.0
        %477 = vmatprep.subr.mxu0 0.0
        %478 = vmatpush1.msra.mxu0 0.0
        %479 = vmatprep.subr.mxu0 0.0
        %480 = vmatpush1.msra.mxu0 0.0
        %481 = vmatprep.subr.mxu0 0.0
        %482 = vmatpush1.msra.mxu0 0.0
        %483 = vmatprep.subr.mxu0 0.0
        %484 = vmatpush1.msra.mxu0 0.0
        %485 = vmatprep.subr.mxu0 0.0
        %486 = vmatpush1.msra.mxu0 0.0
        %487 = vmatprep.subr.mxu0 0.0
        %488 = vmatpush1.msra.mxu0 0.0
        %489 = vmatprep.subr.mxu0 0.0
        %490 = vmatpush1.msra.mxu0 0.0
        %491 = vmatprep.subr.mxu0 0.0
        %492 = vmatpush1.msra.mxu0 0.0
        %493 = vmatprep.subr.mxu0 0.0
        %494 = vmatpush1.msra.mxu0 0.0
        %495 = vmatprep.subr.mxu0 0.0
        %496 = vmatpush1.msra.mxu0 0.0
        %497 = vmatprep.subr.mxu0 0.0
        %498 = vmatpush1.msra.mxu0 0.0
        %499 = vmatprep.subr.mxu0 0.0
        %500 = vmatpush1.msra.mxu0 0.0
        %501 = vmatprep.mubr.f32.mxu0 0.0
        %502 = vmatmul.mubr.f32.gmra.mrb[0].mxu0 %v435
        %v503 = vpop.f32.mrb[0].mxu0
        %v504 = vadd.f32 %v431, %v503
        %v505 = vpop.f32.mrb[0].mxu0
        %506 = vdwg.mxu0
        %v507 = vld [vmem:[#allocation5] sm:$0x1]
        %v508 = vld [vmem:[#allocation6] sm:$0x1]
        %v509 = vld [vmem:[#allocation3] sm:$0xff]
        %v510 = vld [vmem:[#allocation4] sm:$0xff]
        %v512 = vlaneseq
        %v513 = vshrl.u32 %v512, 7
        %v514 = vsub.s32 0, %v513
        %v515 = vrot.slane %v508, %v514
        %v517 = vmul.f32 %v515, %v510
        %v518 = vsub.f32 1.0, %v508
        %v520 = vlaneseq
        %v521 = vshrl.u32 %v520, 7
        %v522 = vsub.s32 0, %v521
        %v523 = vrot.slane %v518, %v522
        %v525 = vmul.f32 %v523, %v509
        %v526 = vadd.f32 %v517, %v525
        %v527 = vmul.f32 %v526, 1.8
        %v528 = vadd.f32 %v527, 0.01
        %v529 = vld [vmem:[#allocation2] sm:$0xff]
        %v531 = vlaneseq
        %v532 = vshrl.u32 %v531, 7
        %v533 = vsub.s32 0, %v532
        %v534 = vrot.slane %v507, %v533
        %v536 = vmul.f32 %v529, %v534
        %v537 = vsub.f32 1.0, %v507
        %v539 = vlaneseq
        %v540 = vshrl.u32 %v539, 7
        %v541 = vsub.s32 0, %v540
        %v542 = vrot.slane %v537, %v541
        %v544 = vmul.f32 %v542, %v504
        %v545 = vadd.f32 %v536, %v544
        %v546 = vmul.f32 %v528, %v509
        %v547 = vsub.f32 %v545, %v546
        %v548 = vsub.f32 %v547, %v528
        %vm549 = vcmp.gt.f32.partialorder %v548, 0.0
        %v550 = vsel %vm549, 1, 0
        %v551 = vcvt.s32.f32 %v550
        %552 = vst [vmem:[#allocation2] sm:$0xff] %v547
        %553 = vst [vmem:[#allocation4] sm:$0xff] %v526
        %554 = vst [vmem:[#allocation3] sm:$0xff] %v551
        %555 = vst [vmem:[%s393] sm:$0xff] %v551
        %p556 = scmp.eq.s32.totalorder %s30, 15
        // Predicated region
        $region69: #{tpu_custom_call.1} parent=51 // pred_check
          %p557 = pneg %p556
        $region70: #{tpu_custom_call.1} parent=51 // pred_check_branch
          %559 = sbr.rel (%p557) target = $region72
        $region71: #{tpu_custom_call.1} parent=51 // pred_region
          %560 = vst [vmem:[#allocation14] sm:$0xff] %v547
          %561 = vst [vmem:[#allocation16] sm:$0xff] %v526
        $region72: #{tpu_custom_call.1} parent=51 // pred_fallthru
          _
        %s562 = sand.u32 %s211, 1
        %s563 = scalar_lea.sflag [#allocation9], %s562
        %s564 = sand.u32 %s211, 1
        %s565 = smul.addr %s564, 8
        %s566 = scalar_lea.vmem [#allocation13], %s565
        // Predicated region
        $region73: #{tpu_custom_call.1} parent=51 // pred_check
          %p567 = pneg %p221
        $region74: #{tpu_custom_call.1} parent=51 // pred_check_branch
          %569 = sbr.rel (%p567) target = $region76
        $region75: #{tpu_custom_call.1} parent=51 // pred_region
          %s571 = ssub.s32 128, 128
          %572 = vsyncadd %s563, %s571
          %s573 = smul.addr %s30, 128
          %s574 = scalar_lea.hbm %s8, %s573
          %s576 = sshll.u32 %s566, 4
          %s577 = int_to_ptr.vmem [resolvable:$true] %s576
          %579 = dma.vmem_to_hbm [thread:$0]  %s577, 128, %s574, %s563
        $region76: #{tpu_custom_call.1} parent=51 // pred_fallthru
          _
        // Predicated region
        $region77: #{tpu_custom_call.1} parent=51 // pred_check
          %p580 = pneg %p242
        $region78: #{tpu_custom_call.1} parent=51 // pred_check_branch
          %582 = sbr.rel (%p580) target = $region80
        $region79: #{tpu_custom_call.1} parent=51 // pred_region
          %s584 = ssub.s32 128, 128
          %585 = vsyncadd [#allocation15], %s584
          %s587 = sshll.u32 [#allocation14], 4
          %s588 = int_to_ptr.vmem [resolvable:$true] %s587
          %590 = dma.vmem_to_hbm [thread:$0]  %s588, 128, %s9, [#allocation15]
        $region80: #{tpu_custom_call.1} parent=51 // pred_fallthru
          _
        // Predicated region
        $region81: #{tpu_custom_call.1} parent=51 // pred_check
          %p591 = pneg %p263
        $region82: #{tpu_custom_call.1} parent=51 // pred_check_branch
          %593 = sbr.rel (%p591) target = $region84
        $region83: #{tpu_custom_call.1} parent=51 // pred_region
          %s595 = ssub.s32 128, 128
          %596 = vsyncadd [#allocation15], %s595
          %s598 = sshll.u32 [#allocation16], 4
          %s599 = int_to_ptr.vmem [resolvable:$true] %s598
          %601 = dma.vmem_to_hbm [thread:$0]  %s599, 128, %s10, [#allocation15]
        $region84: #{tpu_custom_call.1} parent=51 // pred_fallthru
          _
        // Predicated region
        $region85: #{tpu_custom_call.1} parent=51 // pred_check
          %p602 = pneg %p242
        $region86: #{tpu_custom_call.1} parent=51 // pred_check_branch
          %604 = sbr.rel (%p602) target = $region88
        $region87: #{tpu_custom_call.1} parent=51 // pred_region
          %605 = dma.done [#allocation15], 128
        $region88: #{tpu_custom_call.1} parent=51 // pred_fallthru
          _
        // Predicated region
        $region89: #{tpu_custom_call.1} parent=51 // pred_check
          %p606 = pneg %p263
        $region90: #{tpu_custom_call.1} parent=51 // pred_check_branch
          %608 = sbr.rel (%p606) target = $region92
        $region91: #{tpu_custom_call.1} parent=51 // pred_region
          %609 = dma.done [#allocation15], 128
        $region92: #{tpu_custom_call.1} parent=51 // pred_fallthru
          _
      $region52: #{tpu_custom_call.1} parent=5 // pred_fallthru
        _
      %p610 = scmp.le.s32.totalorder 2, %s25
      // Predicated region
      $region93: #{tpu_custom_call.1} parent=5 // pred_check
        %p611 = pneg %p610
      $region94: #{tpu_custom_call.1} parent=5 // pred_check_branch
        %613 = sbr.rel (%p611) target = $region96
      $region95: #{tpu_custom_call.1} parent=5 // pred_region
        %s614 = ssub.s32 %s25, 2
        // Predicated region
        $region97: #{tpu_custom_call.1} parent=95 // pred_check
          %p615 = pneg %p227
        $region98: #{tpu_custom_call.1} parent=95 // pred_check_branch
          %617 = sbr.rel (%p615) target = $region100
        $region99: #{tpu_custom_call.1} parent=95 // pred_region
          %s618 = sand.u32 %s212, 1
          %s619 = scalar_lea.sflag [#allocation9], %s618
          %s620 = sand.u32 %s212, 1
          %s621 = smul.addr %s620, 8
          %s622 = scalar_lea.vmem [#allocation13], %s621
          %623 = dma.done %s619, 128
        $region100: #{tpu_custom_call.1} parent=95 // pred_fallthru
          _
      $region96: #{tpu_custom_call.1} parent=5 // pred_fallthru
        _
    $region6: #{tpu_custom_call.1} parent=1 // loop_footer
      %s29 = sadd.s32 1, %s25
    $region7: #{tpu_custom_call.1} parent=1 // loop_footer_branch
      %24 = sbr.rel target = $region3
    $region8: #{tpu_custom_call.1} parent=1 // loop_exit
      _
    %624 = vsyncpa [#allocation8], 1
    %s625 = scalar_lea.sflag [#allocation8], 1
    %626 = vsyncpa %s625, 1
    %627 = vsyncpa [#allocation11], 1
    %628 = vsyncpa [#allocation9], 1
    %s629 = scalar_lea.sflag [#allocation9], 1
    %630 = vsyncpa %s629, 1
    %631 = vsyncpa [#allocation15], 1

</llo_original>
